<compile_context>
chip_gen: v7x
topology: tpu7x:2x2x1
jax: 0.10.0
libtpu: 0.0.40
codegen_flags: <defaults>
</compile_context>

<pallas_src>
import functools

import jax
import jax.numpy as jnp
from jax.experimental import pallas as pl
from jax.experimental.pallas import tpu as pltpu


def mlp_kernel(x_ref, w1_ref, b1_ref, w2_ref, b2_ref, o_ref):
    # First matmul on the MXU in the weight dtype (bf16 by default), f32 acc.
    x = x_ref[...].astype(w1_ref.dtype)
    h = jnp.dot(x, w1_ref[...], preferred_element_type=jnp.float32)
    # Bias-add + ReLU in f32 (v5e VPU/EUP have no bf16 path).
    h = jnp.maximum(h + b1_ref[...], 0.0)
    # Second matmul: cast activations to the MXU dtype, accumulate in f32.
    out = jnp.dot(h.astype(w2_ref.dtype), w2_ref[...],
                  preferred_element_type=jnp.float32)
    o_ref[...] = (out + b2_ref[...]).astype(o_ref.dtype)


def prepare_mlp_params(w1, b1, w2, b2, *, mxu_dtype=jnp.bfloat16):
    """One-time parameter prep (hoisted out of the per-call hot path).

    * Pads the action dim of W2/b2 up to a multiple of 128 lanes so kernel
      output stores are lane-dense (unmasked vst).
    * Casts the MXU operands W1/W2 to `mxu_dtype` (kernel accumulates in f32).
      Biases stay f32 because bias-add / ReLU run in f32 on the VPU.
    Returns (w1, b1, w2_padded, b2_padded) ready for mlp_pallas().
    """
    hidden_size, action_size = w2.shape
    b1 = jnp.asarray(b1, jnp.float32).reshape(1, -1)
    b2 = jnp.asarray(b2, jnp.float32).reshape(1, -1)
    act_pad = pl.cdiv(action_size, 128) * 128
    if act_pad != action_size:
        w2 = jnp.zeros((hidden_size, act_pad), w2.dtype).at[:, :action_size].set(w2)
        b2 = jnp.zeros((1, act_pad), jnp.float32).at[:, :action_size].set(b2)
    return w1.astype(mxu_dtype), b1, w2.astype(mxu_dtype), b2


def _choose_block_m(batch: int) -> int:
    """Batch tile: multiple of 8 sublanes, capped at 512 rows, and >= 2 grid
    steps whenever the batch is large enough (so v7x megacore gets both TCs)."""
    round8 = lambda n: pl.cdiv(n, 8) * 8
    if batch <= 128:
        return round8(max(batch, 1))      # single block covering the batch
    return min(512, round8(pl.cdiv(batch, 2)))


@functools.partial(jax.jit, static_argnames=("action_size",))
def mlp_pallas(x, w1, b1, w2, b2, *, action_size):
    """x: (B, in) f32; (w1, b1, w2, b2) from prepare_mlp_params().
    Returns (B, action_size) in x.dtype."""
    B, in_features = x.shape
    hidden_size = w1.shape[1]
    act_pad = w2.shape[1]

    tm = _choose_block_m(B)
    grid_m = pl.cdiv(B, tm)

    # x / out tiles move with the grid; weights & biases stay VMEM-resident.
    in_specs = [
        pl.BlockSpec((tm, in_features), lambda i: (i, 0)),            # x (tiled)
        pl.BlockSpec((in_features, hidden_size), lambda i: (0, 0)),   # W1 (resident)
        pl.BlockSpec((1, hidden_size), lambda i: (0, 0)),             # b1 (resident)
        pl.BlockSpec((hidden_size, act_pad), lambda i: (0, 0)),       # W2 (resident)
        pl.BlockSpec((1, act_pad), lambda i: (0, 0)),                 # b2 (resident)
    ]
    out_specs = pl.BlockSpec((tm, act_pad), lambda i: (i, 0))

    m_total = grid_m * tm
    w_bytes = jnp.dtype(w1.dtype).itemsize
    x_bytes = jnp.dtype(x.dtype).itemsize
    cost = pl.CostEstimate(
        flops=2 * m_total * (in_features * hidden_size + hidden_size * act_pad),
        transcendentals=0,
        bytes_accessed=(
            x_bytes * m_total * in_features                       # x
            + w_bytes * (in_features * hidden_size                # W1
                         + hidden_size * act_pad)                 # W2
            + 4 * (hidden_size + act_pad)                         # biases (f32)
            + x_bytes * m_total * act_pad                         # out
        ),
    )

    out_padded = pl.pallas_call(
        mlp_kernel,
        out_shape=jax.ShapeDtypeStruct((B, act_pad), x.dtype),
        grid=(grid_m,),
        in_specs=in_specs,
        out_specs=out_specs,
        compiler_params=pltpu.CompilerParams(
            dimension_semantics=("parallel",),   # batch shards across TCs on v7x
        ),
        cost_estimate=cost,
    )(x, w1, b1, w2, b2)

    # Only the lane padding is stripped; no batch padding was added.
    return out_padded[:, :action_size]


def init_linear_params(key, in_features, out_features, dtype=jnp.float32):
    """Mimics PyTorch nn.Linear default init: U(-1/sqrt(in), 1/sqrt(in)).
    Returns W already transposed to (in_features, out_features)."""
    k_w, k_b = jax.random.split(key)
    bound = 1.0 / (in_features ** 0.5)
    w = jax.random.uniform(k_w, (in_features, out_features), dtype,
                           minval=-bound, maxval=bound)
    b = jax.random.uniform(k_b, (1, out_features), dtype,
                           minval=-bound, maxval=bound)
    return w, b


if __name__ == "__main__":
    # Shapes consistent with the module: flat feature input, hidden=512 (the
    # nn.Module default), a handful of actions.  Batch=256 -> 2 x 128-row grid
    # steps (both v7x TCs busy, per-call overhead amortized).
    batch = 256
    input_size = 32
    hidden_size = 512
    action_size = 8

    key = jax.random.PRNGKey(0)
    k_x, k_l1, k_l2 = jax.random.split(key, 3)

    x = jax.random.normal(k_x, (batch, input_size), dtype=jnp.float32)
    w1, b1 = init_linear_params(k_l1, input_size, hidden_size)
    w2, b2 = init_linear_params(k_l2, hidden_size, action_size)

    # Pure-JAX f32 reference of the PyTorch forward.
    ref = jnp.maximum(x @ w1 + b1, 0.0) @ w2 + b2

    # --- f32 MXU path: bit-tight against the f32 reference. ---
    p32 = prepare_mlp_params(w1, b1, w2, b2, mxu_dtype=jnp.float32)
    out32 = jax.block_until_ready(mlp_pallas(x, *p32, action_size=action_size))
    assert out32.shape == (batch, action_size)
    assert jnp.allclose(out32, ref, atol=1e-5, rtol=1e-5)

    # --- bf16 MXU path (default; halves weight DMA bytes / full-rate MXU on
    #     v6e/v7x).  f32 accumulation, so only bf16 operand rounding shows up;
    #     tolerance vs. the f32 reference is deliberately widened. ---
    pbf = prepare_mlp_params(w1, b1, w2, b2)            # mxu_dtype=bf16
    outbf = jax.block_until_ready(mlp_pallas(x, *pbf, action_size=action_size))
    h_ref = jnp.maximum(
        jnp.dot(x.astype(jnp.bfloat16), w1.astype(jnp.bfloat16),
                preferred_element_type=jnp.float32) + b1, 0.0)
    ref_bf = jnp.dot(h_ref.astype(jnp.bfloat16), w2.astype(jnp.bfloat16),
                     preferred_element_type=jnp.float32) + b2
    assert jnp.allclose(outbf, ref_bf, atol=1e-3, rtol=1e-3)   # matched precision
    assert jnp.allclose(outbf, ref, atol=5e-2, rtol=5e-2)      # bf16 vs f32 module

    # --- partial trailing block: batch not a multiple of the tile, no pad. ---
    out_small = jax.block_until_ready(
        mlp_pallas(x[:10], *p32, action_size=action_size))
    assert out_small.shape == (10, action_size)
    assert jnp.allclose(out_small, ref[:10], atol=1e-5, rtol=1e-5)

    print("KERNEL_OK")
</pallas_src>

<mosaic_0001>
module attributes {stable_mosaic.version = 11 : i64} {
  func.func @mlp_kernel(%arg0: i32, %arg1: memref<128x32xf32, #tpu.memory_space<vmem>>, %arg2: memref<32x512xf32, #tpu.memory_space<vmem>>, %arg3: memref<1x512xf32, #tpu.memory_space<vmem>>, %arg4: memref<512x128xf32, #tpu.memory_space<vmem>>, %arg5: memref<1x128xf32, #tpu.memory_space<vmem>>, %arg6: memref<128x128xf32, #tpu.memory_space<vmem>>) attributes {dimension_semantics = [#tpu.dimension_semantics<parallel>], iteration_bounds = array<i64: 2>, scalar_prefetch = 0 : i64, scratch_operands = 0 : i64, tpu.core_type = #tpu.core_type<tc>, window_params = [{transform_indices = @transform_0, window_bounds = array<i64: 128, 32>}, {pipeline_mode = #tpu.pipeline_mode<synchronous>, transform_indices = @transform_1, window_bounds = array<i64: 32, 512>}, {pipeline_mode = #tpu.pipeline_mode<synchronous>, transform_indices = @transform_2, window_bounds = array<i64: 1, 512>}, {pipeline_mode = #tpu.pipeline_mode<synchronous>, transform_indices = @transform_3, window_bounds = array<i64: 512, 128>}, {pipeline_mode = #tpu.pipeline_mode<synchronous>, transform_indices = @transform_4, window_bounds = array<i64: 1, 128>}, {transform_indices = @transform_5, window_bounds = array<i64: 128, 128>}]} {
    %c0 = arith.constant 0 : index
    %c0_0 = arith.constant 0 : index
    %0 = vector.load %arg1[%c0, %c0_0] : memref<128x32xf32, #tpu.memory_space<vmem>>, vector<128x32xf32>
    %c0_1 = arith.constant 0 : index
    %c0_2 = arith.constant 0 : index
    %1 = vector.load %arg2[%c0_1, %c0_2] : memref<32x512xf32, #tpu.memory_space<vmem>>, vector<32x512xf32>
    %cst = arith.constant dense<0.000000e+00> : vector<128x512xf32>
    %2 = tpu.matmul %0, %1, %cst {dimension_numbers = #tpu.dot_dimension_numbers<[1], [0], [0], [1], [0, 0, 1, 1], [], []>} : vector<128x32xf32>, vector<32x512xf32>, vector<128x512xf32> -> vector<128x512xf32>
    %c0_3 = arith.constant 0 : index
    %c0_4 = arith.constant 0 : index
    %3 = vector.load %arg3[%c0_3, %c0_4] : memref<1x512xf32, #tpu.memory_space<vmem>>, vector<1x512xf32>
    %4 = vector.broadcast %3 : vector<1x512xf32> to vector<128x512xf32>
    %5 = arith.addf %2, %4 : vector<128x512xf32>
    %cst_5 = arith.constant 0.000000e+00 : f32
    %6 = vector.broadcast %cst_5 : f32 to vector<128x512xf32>
    %7 = arith.maximumf %5, %6 : vector<128x512xf32>
    %c0_6 = arith.constant 0 : index
    %c0_7 = arith.constant 0 : index
    %8 = vector.load %arg4[%c0_6, %c0_7] : memref<512x128xf32, #tpu.memory_space<vmem>>, vector<512x128xf32>
    %cst_8 = arith.constant dense<0.000000e+00> : vector<128x128xf32>
    %9 = tpu.matmul %7, %8, %cst_8 {dimension_numbers = #tpu.dot_dimension_numbers<[1], [0], [0], [1], [0, 0, 1, 1], [], []>} : vector<128x512xf32>, vector<512x128xf32>, vector<128x128xf32> -> vector<128x128xf32>
    %c0_9 = arith.constant 0 : index
    %c0_10 = arith.constant 0 : index
    %10 = vector.load %arg5[%c0_9, %c0_10] : memref<1x128xf32, #tpu.memory_space<vmem>>, vector<1x128xf32>
    %11 = vector.broadcast %10 : vector<1x128xf32> to vector<128x128xf32>
    %12 = arith.addf %9, %11 : vector<128x128xf32>
    %c0_11 = arith.constant 0 : index
    %c0_12 = arith.constant 0 : index
    %13 = vector.load %arg6[%c0_11, %c0_12] : memref<128x128xf32, #tpu.memory_space<vmem>>, vector<128x128xf32>
    tpu.vector_store %arg6[%c0_11, %c0_12], %12 {strides = array<i32>} : memref<128x128xf32, #tpu.memory_space<vmem>>, vector<128x128xf32>,
    return
  }
  func.func @transform_0(%arg0: i32) -> (i32, i32) {
    %c0_i32 = arith.constant 0 : i32
    %c0_i32_0 = arith.constant 0 : i32
    return %arg0, %c0_i32 : i32, i32
  }
  func.func @transform_1(%arg0: i32) -> (i32, i32) {
    %c0_i32 = arith.constant 0 : i32
    %c0_i32_0 = arith.constant 0 : i32
    %c0_i32_1 = arith.constant 0 : i32
    return %c0_i32, %c0_i32_0 : i32, i32
  }
  func.func @transform_2(%arg0: i32) -> (i32, i32) {
    %c0_i32 = arith.constant 0 : i32
    %c0_i32_0 = arith.constant 0 : i32
    %c0_i32_1 = arith.constant 0 : i32
    return %c0_i32, %c0_i32_0 : i32, i32
  }
  func.func @transform_3(%arg0: i32) -> (i32, i32) {
    %c0_i32 = arith.constant 0 : i32
    %c0_i32_0 = arith.constant 0 : i32
    %c0_i32_1 = arith.constant 0 : i32
    return %c0_i32, %c0_i32_0 : i32, i32
  }
  func.func @transform_4(%arg0: i32) -> (i32, i32) {
    %c0_i32 = arith.constant 0 : i32
    %c0_i32_0 = arith.constant 0 : i32
    %c0_i32_1 = arith.constant 0 : i32
    return %c0_i32, %c0_i32_0 : i32, i32
  }
  func.func @transform_5(%arg0: i32) -> (i32, i32) {
    %c0_i32 = arith.constant 0 : i32
    %c0_i32_0 = arith.constant 0 : i32
    return %arg0, %c0_i32 : i32, i32
  }
}

</mosaic_0001>

<llo_original>
// kernel: mlp_pallas.1
$region0: #{mlp_pallas.1}
  #allocation0 [shape = 'u32[]', space=smem, size = 0x4, offset = 0x4, fixed_abs, tag = 'smem constant byte address 0x4 - core index']
  #allocation1 [shape = 'u32[144,128]{1,0:T(1,128)}', space=vmem, size = 0x12000, scoped, tag = 'internal scratch']
  %s0 = inlined_call_operand.vmem [shape: f32[256,32], index: 0, kind: input, shape index: {}]
  %s1 = inlined_call_operand.vmem [shape: f32[32,512], index: 1, kind: input, shape index: {}]
  %s2 = inlined_call_operand.vmem [shape: f32[1,512], index: 2, kind: input, shape index: {}]
  %s3 = inlined_call_operand.hbm [shape: f32[512,128], index: 3, kind: input, shape index: {}]
  %s4 = inlined_call_operand.vmem [shape: f32[1,128], index: 4, kind: input, shape index: {}]
  %s5 = inlined_call_operand.vmem [shape: f32[256,128], index: 5, kind: output, shape index: {}]
  %s6 = sld [smem:[#allocation0]]
  $region57: #{mlp_pallas.1} parent=0
    _
  %s8 = ssub.s32 1, %s6
  %s9 = scalar_select 0, %s8, %s6
  $region1: #{mlp_pallas.1} parent=0
    #allocation2 [shape = 'u8[262144]{0}', space=vmem, size = 0x40000, scoped, tag = 'input window, operand 3, single buffered']
    #allocation3 [shape = 's32[2]{0}', space=sflag, size = 0x8, scoped, tag = 'scoped memory for mlp_pallas.1']
    %10 = vsyncpa [#allocation3], 0
    loop: start=0, step=1, limit=4
    $region2: #{mlp_pallas.1} parent=1 // loop_pre_header
      _
    $region3: #{mlp_pallas.1} parent=1 // loop_header
      %s12 = sphi 0, %s16
      %p13 = scmp.ge.s32.totalorder %s12, 4
      %s22 = sphi 0, %s24
      %s25 = sphi 0, %s22
      %s26 = sphi 0, %s25
      %s42 = sphi 0, %s26
      %s46 = sphi 0, %s46
      %s48 = sphi 0, %s46
      %s49 = sphi 0, %s48
      %s63 = sphi 0, %s49
      %s67 = sphi 0, %s67
      %s69 = sphi 0, %s67
      %s70 = sphi 0, %s69
      %s84 = sphi 0, %s70
      %s88 = sphi 0, %s88
      %s90 = sphi 0, %s88
      %s91 = sphi 0, %s90
      %s105 = sphi 0, %s91
      %s109 = sphi 0, %s109
      %s111 = sphi 0, %s109
      %s112 = sphi 0, %s111
      %s126 = sphi 0, %s112
      %s132 = sphi 0, %s134
      %s135 = sphi 0, %s132
      %s136 = sphi 0, %s135
      %s152 = sphi 0, %s136
    $region4: #{mlp_pallas.1} parent=1 // loop_header_branch
      %15 = sbr.rel (%p13) target = $region8
    $region5: #{mlp_pallas.1} parent=1 // loop_body
      %s17 = ssub.s32 %s12, 1
      %s18 = ssub.s32 %s12, 2
      %s19 = sadd.s32 %s12, 1
      %s20 = ssub.s32 %s12, %s19
      %p21 = scmp.eq.s32.totalorder %s20, 0
      %s23 = sadd.s32 %s22, 1
      %s24 = scalar_select %p21, %s22, %s23
      %p27 = pneg %p21
      %p28 = scmp.eq.s32.totalorder %s12, 1
      %p29 = por %p27, %p28
      %p30 = scmp.ne.s32.totalorder %s22, %s25
      %p31 = scmp.eq.s32.totalorder %s12, 0
      %p32 = por %p30, %p31
      %p33 = scmp.ne.s32.totalorder %s22, %s25
      %p34 = scmp.eq.s32.totalorder %s17, 1
      %p35 = por %p33, %p34
      %p36 = scmp.ne.s32.totalorder %s25, %s26
      %p37 = scmp.eq.s32.totalorder %s17, 0
      %p38 = por %p36, %p37
      %p39 = scmp.ne.s32.totalorder %s25, %s26
      %p40 = scmp.eq.s32.totalorder %s18, 1
      %p41 = por %p39, %p40
      %p43 = scmp.ne.s32.totalorder %s26, %s42
      %p44 = scmp.eq.s32.totalorder %s18, 0
      %p45 = por %p43, %p44
      %s47 = sadd.s32 %s46, 1
      %p50 = scmp.eq.s32.totalorder %s12, 1
      %p51 = scmp.ne.s32.totalorder %s46, %s48
      %p52 = scmp.eq.s32.totalorder %s12, 0
      %p53 = por %p51, %p52
      %p54 = scmp.ne.s32.totalorder %s46, %s48
      %p55 = scmp.eq.s32.totalorder %s17, 1
      %p56 = por %p54, %p55
      %p57 = scmp.ne.s32.totalorder %s48, %s49
      %p58 = scmp.eq.s32.totalorder %s17, 0
      %p59 = por %p57, %p58
      %p60 = scmp.ne.s32.totalorder %s48, %s49
      %p61 = scmp.eq.s32.totalorder %s18, 1
      %p62 = por %p60, %p61
      %p64 = scmp.ne.s32.totalorder %s49, %s63
      %p65 = scmp.eq.s32.totalorder %s18, 0
      %p66 = por %p64, %p65
      %s68 = sadd.s32 %s67, 1
      %p71 = scmp.eq.s32.totalorder %s12, 1
      %p72 = scmp.ne.s32.totalorder %s67, %s69
      %p73 = scmp.eq.s32.totalorder %s12, 0
      %p74 = por %p72, %p73
      %p75 = scmp.ne.s32.totalorder %s67, %s69
      %p76 = scmp.eq.s32.totalorder %s17, 1
      %p77 = por %p75, %p76
      %p78 = scmp.ne.s32.totalorder %s69, %s70
      %p79 = scmp.eq.s32.totalorder %s17, 0
      %p80 = por %p78, %p79
      %p81 = scmp.ne.s32.totalorder %s69, %s70
      %p82 = scmp.eq.s32.totalorder %s18, 1
      %p83 = por %p81, %p82
      %p85 = scmp.ne.s32.totalorder %s70, %s84
      %p86 = scmp.eq.s32.totalorder %s18, 0
      %p87 = por %p85, %p86
      %s89 = sadd.s32 %s88, 1
      %p92 = scmp.eq.s32.totalorder %s12, 1
      %p93 = scmp.ne.s32.totalorder %s88, %s90
      %p94 = scmp.eq.s32.totalorder %s12, 0
      %p95 = por %p93, %p94
      %p96 = scmp.ne.s32.totalorder %s88, %s90
      %p97 = scmp.eq.s32.totalorder %s17, 1
      %p98 = por %p96, %p97
      %p99 = scmp.ne.s32.totalorder %s90, %s91
      %p100 = scmp.eq.s32.totalorder %s17, 0
      %p101 = por %p99, %p100
      %p102 = scmp.ne.s32.totalorder %s90, %s91
      %p103 = scmp.eq.s32.totalorder %s18, 1
      %p104 = por %p102, %p103
      %p106 = scmp.ne.s32.totalorder %s91, %s105
      %p107 = scmp.eq.s32.totalorder %s18, 0
      %p108 = por %p106, %p107
      %s110 = sadd.s32 %s109, 1
      %p113 = scmp.eq.s32.totalorder %s12, 1
      %p114 = scmp.ne.s32.totalorder %s109, %s111
      %p115 = scmp.eq.s32.totalorder %s12, 0
      %p116 = por %p114, %p115
      %p117 = scmp.ne.s32.totalorder %s109, %s111
      %p118 = scmp.eq.s32.totalorder %s17, 1
      %p119 = por %p117, %p118
      %p120 = scmp.ne.s32.totalorder %s111, %s112
      %p121 = scmp.eq.s32.totalorder %s17, 0
      %p122 = por %p120, %p121
      %p123 = scmp.ne.s32.totalorder %s111, %s112
      %p124 = scmp.eq.s32.totalorder %s18, 1
      %p125 = por %p123, %p124
      %p127 = scmp.ne.s32.totalorder %s112, %s126
      %p128 = scmp.eq.s32.totalorder %s18, 0
      %p129 = por %p127, %p128
      %s130 = ssub.s32 %s12, %s19
      %p131 = scmp.eq.s32.totalorder %s130, 0
      %s133 = sadd.s32 %s132, 1
      %s134 = scalar_select %p131, %s132, %s133
      %p137 = pneg %p131
      %p138 = scmp.eq.s32.totalorder %s12, 1
      %p139 = por %p137, %p138
      %p140 = scmp.ne.s32.totalorder %s132, %s135
      %p141 = scmp.eq.s32.totalorder %s12, 0
      %p142 = por %p140, %p141
      %p143 = scmp.ne.s32.totalorder %s132, %s135
      %p144 = scmp.eq.s32.totalorder %s17, 1
      %p145 = por %p143, %p144
      %p146 = scmp.ne.s32.totalorder %s135, %s136
      %p147 = scmp.eq.s32.totalorder %s17, 0
      %p148 = por %p146, %p147
      %p149 = scmp.ne.s32.totalorder %s135, %s136
      %p150 = scmp.eq.s32.totalorder %s18, 1
      %p151 = por %p149, %p150
      %p153 = scmp.ne.s32.totalorder %s136, %s152
      %p154 = scmp.eq.s32.totalorder %s18, 0
      %p155 = por %p153, %p154
      %p156 = scmp.le.s32.totalorder 1, %s12
      %p157 = scmp.lt.s32.totalorder %s12, 3
      %p158 = pnand %p156, %p157
      %p159 = pneg %p158
      // Predicated region
      $region9: #{mlp_pallas.1} parent=5 // pred_check
        _
      $region10: #{mlp_pallas.1} parent=5 // pred_check_branch
        %161 = sbr.rel (%p158) target = $region12
      $region11: #{mlp_pallas.1} parent=5 // pred_region
        %s162 = ssub.s32 %s12, 1
        // Predicated region
        $region13: #{mlp_pallas.1} parent=11 // pred_check
          %p163 = pneg %p59
        $region14: #{mlp_pallas.1} parent=11 // pred_check_branch
          %165 = sbr.rel (%p163) target = $region16
        $region15: #{mlp_pallas.1} parent=11 // pred_region
          _
        $region16: #{mlp_pallas.1} parent=11 // pred_fallthru
          _
        // Predicated region
        $region17: #{mlp_pallas.1} parent=11 // pred_check
          %p166 = pneg %p80
        $region18: #{mlp_pallas.1} parent=11 // pred_check_branch
          %168 = sbr.rel (%p166) target = $region20
        $region19: #{mlp_pallas.1} parent=11 // pred_region
          _
        $region20: #{mlp_pallas.1} parent=11 // pred_fallthru
          _
        // Predicated region
        $region21: #{mlp_pallas.1} parent=11 // pred_check
          %p169 = pneg %p101
        $region22: #{mlp_pallas.1} parent=11 // pred_check_branch
          %171 = sbr.rel (%p169) target = $region24
        $region23: #{mlp_pallas.1} parent=11 // pred_region
          %s173 = ssub.s32 8192, 8192
          %174 = vsyncadd [#allocation3], %s173
          %s175 = sshll.u32 [#allocation2], 4
          %s176 = int_to_ptr.vmem [resolvable:$true] %s175
          %181 = dma.hbm_to_vmem [thread:$0]  %s3, 8192, %s176, [#allocation3], 128, 128, 8
        $region24: #{mlp_pallas.1} parent=11 // pred_fallthru
          _
        // Predicated region
        $region25: #{mlp_pallas.1} parent=11 // pred_check
          %p182 = pneg %p122
        $region26: #{mlp_pallas.1} parent=11 // pred_check_branch
          %184 = sbr.rel (%p182) target = $region28
        $region27: #{mlp_pallas.1} parent=11 // pred_region
          _
        $region28: #{mlp_pallas.1} parent=11 // pred_fallthru
          _
      $region12: #{mlp_pallas.1} parent=5 // pred_fallthru
        _
      %p185 = scmp.lt.s32.totalorder %s12, 2
      // Predicated region
      $region29: #{mlp_pallas.1} parent=5 // pred_check
        %p186 = pneg %p185
      $region30: #{mlp_pallas.1} parent=5 // pred_check_branch
        %188 = sbr.rel (%p186) target = $region32
      $region31: #{mlp_pallas.1} parent=5 // pred_region
        // Predicated region
        $region33: #{mlp_pallas.1} parent=31 // pred_check
          %p189 = pneg %p32
        $region34: #{mlp_pallas.1} parent=31 // pred_check_branch
          %191 = sbr.rel (%p189) target = $region36
        $region35: #{mlp_pallas.1} parent=31 // pred_region
          %s192 = smul.u32 16, %s12
          %p193 = scmp.lt.s32.totalorder %s192, 31
          %s194 = scalar_select %p193, %s192, 31
          %s195 = smul.addr %s194, 8
          %s196 = scalar_lea.vmem %s0, %s195
          %s197 = smul.u32 16, %s12
        $region36: #{mlp_pallas.1} parent=31 // pred_fallthru
          _
      $region32: #{mlp_pallas.1} parent=5 // pred_fallthru
        _
      %p198 = scmp.le.s32.totalorder 1, %s12
      %p199 = scmp.lt.s32.totalorder %s12, 3
      %p200 = pnand %p198, %p199
      %p201 = pneg %p200
      // Predicated region
      $region37: #{mlp_pallas.1} parent=5 // pred_check
        _
      $region38: #{mlp_pallas.1} parent=5 // pred_check_branch
        %203 = sbr.rel (%p200) target = $region40
      $region39: #{mlp_pallas.1} parent=5 // pred_region
        %s204 = ssub.s32 %s12, 1
        // Predicated region
        $region41: #{mlp_pallas.1} parent=39 // pred_check
          %p205 = pneg %p101
        $region42: #{mlp_pallas.1} parent=39 // pred_check_branch
          %207 = sbr.rel (%p205) target = $region44
        $region43: #{mlp_pallas.1} parent=39 // pred_region
          %208 = dma.done [#allocation3], 8192
        $region44: #{mlp_pallas.1} parent=39 // pred_fallthru
          _
        %s209 = smul.u32 16, %s17
        %p210 = scmp.lt.s32.totalorder %s209, 31
        %s211 = scalar_select %p210, %s209, 31
        %s212 = smul.addr %s211, 8
        %s213 = scalar_lea.vmem %s0, %s212
        %p214 = pneg %p38
        %p215 = pneg %p35
        %p216 = pneg %p59
        %p217 = pneg %p56
        %p218 = pneg %p80
        %p219 = pneg %p77
        %p220 = pneg %p101
        %p221 = pneg %p98
        %p222 = pneg %p122
        %p223 = pneg %p119
        %p224 = pneg %p148
        %p225 = pneg %p145
        %s226 = smul.u32 16, %s17
        %p227 = scmp.lt.s32.totalorder %s226, 31
        %s228 = scalar_select %p227, %s226, 31
        %s229 = smul.addr %s228, 8
        %s230 = scalar_lea.vmem %s5, %s229
        %s231 = smul.u32 16, %s17
        %p232 = scmp.lt.s32.totalorder %s231, 31
        %s233 = scalar_select %p232, %s231, 31
        %s234 = smul.addr %s233, 8
        %s235 = scalar_lea.vmem %s0, %s234
        %s236 = smul.u32 16, %s17
        %s237 = smul.u32 16, %s17
        %p238 = scmp.lt.s32.totalorder %s237, 31
        %s239 = scalar_select %p238, %s237, 31
        %s240 = smul.addr %s239, 8
        %s241 = scalar_lea.vmem %s5, %s240
        %s242 = smul.u32 16, %s17
        %v243 = vld [vmem:[%s235] sm:$0xff]
        %v244 = vld [vmem:[%s235 + $0x8] sm:$0xff]
        %v245 = vld [vmem:[%s235 + $0x10] sm:$0xff]
        %v246 = vld [vmem:[%s235 + $0x18] sm:$0xff]
        %v247 = vld [vmem:[%s235 + $0x20] sm:$0xff]
        %v248 = vld [vmem:[%s235 + $0x28] sm:$0xff]
        %v249 = vld [vmem:[%s235 + $0x30] sm:$0xff]
        %v250 = vld [vmem:[%s235 + $0x38] sm:$0xff]
        %v251 = vld [vmem:[%s235 + $0x40] sm:$0xff]
        %v252 = vld [vmem:[%s235 + $0x48] sm:$0xff]
        %v253 = vld [vmem:[%s235 + $0x50] sm:$0xff]
        %v254 = vld [vmem:[%s235 + $0x58] sm:$0xff]
        %v255 = vld [vmem:[%s235 + $0x60] sm:$0xff]
        %v256 = vld [vmem:[%s235 + $0x68] sm:$0xff]
        %v257 = vld [vmem:[%s235 + $0x70] sm:$0xff]
        %v258 = vld [vmem:[%s235 + $0x78] sm:$0xff]
        %v259 = vld [vmem:[%s1] sm:$0xff]
        %v260 = vld [vmem:[%s1 + $0x8] sm:$0xff]
        %v261 = vld [vmem:[%s1 + $0x10] sm:$0xff]
        %v262 = vld [vmem:[%s1 + $0x18] sm:$0xff]
        %v263 = vld [vmem:[%s1 + $0x20] sm:$0xff]
        %v264 = vld [vmem:[%s1 + $0x28] sm:$0xff]
        %v265 = vld [vmem:[%s1 + $0x30] sm:$0xff]
        %v266 = vld [vmem:[%s1 + $0x38] sm:$0xff]
        %v267 = vld [vmem:[%s1 + $0x40] sm:$0xff]
        %v268 = vld [vmem:[%s1 + $0x48] sm:$0xff]
        %v269 = vld [vmem:[%s1 + $0x50] sm:$0xff]
        %v270 = vld [vmem:[%s1 + $0x58] sm:$0xff]
        %v271 = vld [vmem:[%s1 + $0x60] sm:$0xff]
        %v272 = vld [vmem:[%s1 + $0x68] sm:$0xff]
        %v273 = vld [vmem:[%s1 + $0x70] sm:$0xff]
        %v274 = vld [vmem:[%s1 + $0x78] sm:$0xff]
        %v275 = vld [vmem:[%s2] sm:$0xf]
        %v277 = vlaneseq
        %v278 = vshrl.u32 %v277, 7
        %v279 = vsub.s32 0, %v278
        %v280 = vrot.slane %v275, %v279
        %v281 = vlaneseq
        %v282 = vshrl.u32 %v281, 7
        %v283 = vsub.s32 1, %v282
        %v284 = vrot.slane %v275, %v283
        %v285 = vlaneseq
        %v286 = vshrl.u32 %v285, 7
        %v287 = vsub.s32 2, %v286
        %v288 = vrot.slane %v275, %v287
        %v289 = vlaneseq
        %v290 = vshrl.u32 %v289, 7
        %v291 = vsub.s32 3, %v290
        %v292 = vrot.slane %v275, %v291
        %vm297 = vcmask 261120
        %v299 = vsel %vm297, %v243, 0
        %v302 = vsel %vm297, %v244, 0
        %v305 = vsel %vm297, %v245, 0
        %v308 = vsel %vm297, %v246, 0
        %v311 = vsel %vm297, %v247, 0
        %v314 = vsel %vm297, %v248, 0
        %v317 = vsel %vm297, %v249, 0
        %v320 = vsel %vm297, %v250, 0
        %v323 = vsel %vm297, %v251, 0
        %v326 = vsel %vm297, %v252, 0
        %v329 = vsel %vm297, %v253, 0
        %v332 = vsel %vm297, %v254, 0
        %v335 = vsel %vm297, %v255, 0
        %v338 = vsel %vm297, %v256, 0
        %v341 = vsel %vm297, %v257, 0
        %v344 = vsel %vm297, %v258, 0
        %346 = vmatprep.subr.mxu0 %v260
        %347 = vmatpush1.msra.mxu0 %v259
        %348 = vmatprep.subr.mxu0 %v264
        %349 = vmatpush1.msra.mxu0 %v263
        %350 = vmatprep.subr.mxu0 %v268
        %351 = vmatpush1.msra.mxu0 %v267
        %352 = vmatprep.subr.mxu0 %v272
        %353 = vmatpush1.msra.mxu0 %v271
        %354 = vmatprep.subr.mxu0 0.0
        %355 = vmatpush1.msra.mxu0 0.0
        %356 = vmatprep.subr.mxu0 0.0
        %357 = vmatpush1.msra.mxu0 0.0
        %358 = vmatprep.subr.mxu0 0.0
        %359 = vmatpush1.msra.mxu0 0.0
        %360 = vmatprep.subr.mxu0 0.0
        %361 = vmatpush1.msra.mxu0 0.0
        %362 = vmatprep.subr.mxu0 0.0
        %363 = vmatpush1.msra.mxu0 0.0
        %364 = vmatprep.subr.mxu0 0.0
        %365 = vmatpush1.msra.mxu0 0.0
        %366 = vmatprep.subr.mxu0 0.0
        %367 = vmatpush1.msra.mxu0 0.0
        %368 = vmatprep.subr.mxu0 0.0
        %369 = vmatpush1.msra.mxu0 0.0
        %370 = vmatprep.subr.mxu0 0.0
        %371 = vmatpush1.msra.mxu0 0.0
        %372 = vmatprep.subr.mxu0 0.0
        %373 = vmatpush1.msra.mxu0 0.0
        %374 = vmatprep.subr.mxu0 0.0
        %375 = vmatpush1.msra.mxu0 0.0
        %376 = vmatprep.subr.mxu0 0.0
        %377 = vmatpush1.msra.mxu0 0.0
        %378 = vmatprep.subr.mxu0 0.0
        %379 = vmatpush1.msra.mxu0 0.0
        %380 = vmatprep.subr.mxu0 0.0
        %381 = vmatpush1.msra.mxu0 0.0
        %382 = vmatprep.subr.mxu0 0.0
        %383 = vmatpush1.msra.mxu0 0.0
        %384 = vmatprep.subr.mxu0 0.0
        %385 = vmatpush1.msra.mxu0 0.0
        %386 = vmatprep.subr.mxu0 0.0
        %387 = vmatpush1.msra.mxu0 0.0
        %388 = vmatprep.subr.mxu0 0.0
        %389 = vmatpush1.msra.mxu0 0.0
        %390 = vmatprep.subr.mxu0 0.0
        %391 = vmatpush1.msra.mxu0 0.0
        %392 = vmatprep.subr.mxu0 0.0
        %393 = vmatpush1.msra.mxu0 0.0
        %394 = vmatprep.subr.mxu0 0.0
        %395 = vmatpush1.msra.mxu0 0.0
        %396 = vmatprep.subr.mxu0 0.0
        %397 = vmatpush1.msra.mxu0 0.0
        %398 = vmatprep.subr.mxu0 0.0
        %399 = vmatpush1.msra.mxu0 0.0
        %400 = vmatprep.subr.mxu0 0.0
        %401 = vmatpush1.msra.mxu0 0.0
        %402 = vmatprep.subr.mxu0 0.0
        %403 = vmatpush1.msra.mxu0 0.0
        %404 = vmatprep.subr.mxu0 0.0
        %405 = vmatpush1.msra.mxu0 0.0
        %406 = vmatprep.subr.mxu0 0.0
        %407 = vmatpush1.msra.mxu0 0.0
        %408 = vmatprep.subr.mxu0 0.0
        %409 = vmatpush1.msra.mxu0 0.0
        %410 = vmatprep.mubr.f32.mxu0 0.0
        %411 = vmatmul.mubr.f32.gmra.mrb[0].mxu0 %v299
        %v412 = vpop.f32.mrb[0].mxu0
        %v413 = vadd.f32 %v280, %v412
        %v414 = vpop.f32.mrb[0].mxu0
        %v415 = vadd.f32 %v284, %v414
        %416 = vmatprep.mubr.f32.mxu0 0.0
        %417 = vmatmul.mubr.f32.gmra.mrb[0].mxu0 %v302
        %v418 = vpop.f32.mrb[0].mxu0
        %v419 = vadd.f32 %v280, %v418
        %v420 = vpop.f32.mrb[0].mxu0
        %v421 = vadd.f32 %v284, %v420
        %422 = vmatprep.mubr.f32.mxu0 0.0
        %423 = vmatmul.mubr.f32.gmra.mrb[0].mxu0 %v305
        %v424 = vpop.f32.mrb[0].mxu0
        %v425 = vadd.f32 %v280, %v424
        %v426 = vpop.f32.mrb[0].mxu0
        %v427 = vadd.f32 %v284, %v426
        %428 = vmatprep.mubr.f32.mxu0 0.0
        %429 = vmatmul.mubr.f32.gmra.mrb[0].mxu0 %v308
        %v430 = vpop.f32.mrb[0].mxu0
        %v431 = vadd.f32 %v280, %v430
        %v432 = vpop.f32.mrb[0].mxu0
        %v433 = vadd.f32 %v284, %v432
        %434 = vmatprep.mubr.f32.mxu0 0.0
        %435 = vmatmul.mubr.f32.gmra.mrb[0].mxu0 %v311
        %v436 = vpop.f32.mrb[0].mxu0
        %v437 = vadd.f32 %v280, %v436
        %v438 = vpop.f32.mrb[0].mxu0
        %v439 = vadd.f32 %v284, %v438
        %440 = vmatprep.mubr.f32.mxu0 0.0
        %441 = vmatmul.mubr.f32.gmra.mrb[0].mxu0 %v314
        %v442 = vpop.f32.mrb[0].mxu0
        %v443 = vadd.f32 %v280, %v442
        %v444 = vpop.f32.mrb[0].mxu0
        %v445 = vadd.f32 %v284, %v444
        %446 = vmatprep.mubr.f32.mxu0 0.0
        %447 = vmatmul.mubr.f32.gmra.mrb[0].mxu0 %v317
        %v448 = vpop.f32.mrb[0].mxu0
        %v449 = vadd.f32 %v280, %v448
        %v450 = vpop.f32.mrb[0].mxu0
        %v451 = vadd.f32 %v284, %v450
        %452 = vmatprep.mubr.f32.mxu0 0.0
        %453 = vmatmul.mubr.f32.gmra.mrb[0].mxu0 %v320
        %v454 = vpop.f32.mrb[0].mxu0
        %v455 = vadd.f32 %v280, %v454
        %v456 = vpop.f32.mrb[0].mxu0
        %v457 = vadd.f32 %v284, %v456
        %458 = vmatprep.mubr.f32.mxu0 0.0
        %459 = vmatmul.mubr.f32.gmra.mrb[0].mxu0 %v323
        %v460 = vpop.f32.mrb[0].mxu0
        %v461 = vadd.f32 %v280, %v460
        %v462 = vpop.f32.mrb[0].mxu0
        %v463 = vadd.f32 %v284, %v462
        %464 = vmatprep.mubr.f32.mxu0 0.0
        %465 = vmatmul.mubr.f32.gmra.mrb[0].mxu0 %v326
        %v466 = vpop.f32.mrb[0].mxu0
        %v467 = vadd.f32 %v280, %v466
        %v468 = vpop.f32.mrb[0].mxu0
        %v469 = vadd.f32 %v284, %v468
        %470 = vmatprep.mubr.f32.mxu0 0.0
        %471 = vmatmul.mubr.f32.gmra.mrb[0].mxu0 %v329
        %v472 = vpop.f32.mrb[0].mxu0
        %v473 = vadd.f32 %v280, %v472
        %v474 = vpop.f32.mrb[0].mxu0
        %v475 = vadd.f32 %v284, %v474
        %476 = vmatprep.mubr.f32.mxu0 0.0
        %477 = vmatmul.mubr.f32.gmra.mrb[0].mxu0 %v332
        %v478 = vpop.f32.mrb[0].mxu0
        %v479 = vadd.f32 %v280, %v478
        %v480 = vpop.f32.mrb[0].mxu0
        %v481 = vadd.f32 %v284, %v480
        %482 = vmatprep.mubr.f32.mxu0 0.0
        %483 = vmatmul.mubr.f32.gmra.mrb[0].mxu0 %v335
        %v484 = vpop.f32.mrb[0].mxu0
        %v485 = vadd.f32 %v280, %v484
        %v486 = vpop.f32.mrb[0].mxu0
        %v487 = vadd.f32 %v284, %v486
        %488 = vmatprep.mubr.f32.mxu0 0.0
        %489 = vmatmul.mubr.f32.gmra.mrb[0].mxu0 %v338
        %v490 = vpop.f32.mrb[0].mxu0
        %v491 = vadd.f32 %v280, %v490
        %v492 = vpop.f32.mrb[0].mxu0
        %v493 = vadd.f32 %v284, %v492
        %494 = vmatprep.mubr.f32.mxu0 0.0
        %495 = vmatmul.mubr.f32.gmra.mrb[0].mxu0 %v341
        %v496 = vpop.f32.mrb[0].mxu0
        %v497 = vadd.f32 %v280, %v496
        %v498 = vpop.f32.mrb[0].mxu0
        %v499 = vadd.f32 %v284, %v498
        %500 = vmatprep.mubr.f32.mxu0 0.0
        %501 = vmatmul.mubr.f32.gmra.mrb[0].mxu0 %v344
        %v502 = vpop.f32.mrb[0].mxu0
        %v503 = vadd.f32 %v280, %v502
        %v504 = vpop.f32.mrb[0].mxu0
        %v505 = vadd.f32 %v284, %v504
        %506 = vdwg.mxu0
        %507 = vmatprep.subr.mxu0 %v262
        %508 = vmatpush1.msra.mxu0 %v261
        %509 = vmatprep.subr.mxu0 %v266
        %510 = vmatpush1.msra.mxu0 %v265
        %511 = vmatprep.subr.mxu0 %v270
        %512 = vmatpush1.msra.mxu0 %v269
        %513 = vmatprep.subr.mxu0 %v274
        %514 = vmatpush1.msra.mxu0 %v273
        %515 = vmatprep.subr.mxu0 0.0
        %516 = vmatpush1.msra.mxu0 0.0
        %517 = vmatprep.subr.mxu0 0.0
        %518 = vmatpush1.msra.mxu0 0.0
        %519 = vmatprep.subr.mxu0 0.0
        %520 = vmatpush1.msra.mxu0 0.0
        %521 = vmatprep.subr.mxu0 0.0
        %522 = vmatpush1.msra.mxu0 0.0
        %523 = vmatprep.subr.mxu0 0.0
        %524 = vmatpush1.msra.mxu0 0.0
        %525 = vmatprep.subr.mxu0 0.0
        %526 = vmatpush1.msra.mxu0 0.0
        %527 = vmatprep.subr.mxu0 0.0
        %528 = vmatpush1.msra.mxu0 0.0
        %529 = vmatprep.subr.mxu0 0.0
        %530 = vmatpush1.msra.mxu0 0.0
        %531 = vmatprep.subr.mxu0 0.0
        %532 = vmatpush1.msra.mxu0 0.0
        %533 = vmatprep.subr.mxu0 0.0
        %534 = vmatpush1.msra.mxu0 0.0
        %535 = vmatprep.subr.mxu0 0.0
        %536 = vmatpush1.msra.mxu0 0.0
        %537 = vmatprep.subr.mxu0 0.0
        %538 = vmatpush1.msra.mxu0 0.0
        %539 = vmatprep.subr.mxu0 0.0
        %540 = vmatpush1.msra.mxu0 0.0
        %541 = vmatprep.subr.mxu0 0.0
        %542 = vmatpush1.msra.mxu0 0.0
        %543 = vmatprep.subr.mxu0 0.0
        %544 = vmatpush1.msra.mxu0 0.0
        %545 = vmatprep.subr.mxu0 0.0
        %546 = vmatpush1.msra.mxu0 0.0
        %547 = vmatprep.subr.mxu0 0.0
        %548 = vmatpush1.msra.mxu0 0.0
        %549 = vmatprep.subr.mxu0 0.0
        %550 = vmatpush1.msra.mxu0 0.0
        %551 = vmatprep.subr.mxu0 0.0
        %552 = vmatpush1.msra.mxu0 0.0
        %553 = vmatprep.subr.mxu0 0.0
        %554 = vmatpush1.msra.mxu0 0.0
        %555 = vmatprep.subr.mxu0 0.0
        %556 = vmatpush1.msra.mxu0 0.0
        %557 = vmatprep.subr.mxu0 0.0
        %558 = vmatpush1.msra.mxu0 0.0
        %559 = vmatprep.subr.mxu0 0.0
        %560 = vmatpush1.msra.mxu0 0.0
        %561 = vmatprep.subr.mxu0 0.0
        %562 = vmatpush1.msra.mxu0 0.0
        %563 = vmatprep.subr.mxu0 0.0
        %564 = vmatpush1.msra.mxu0 0.0
        %565 = vmatprep.subr.mxu0 0.0
        %566 = vmatpush1.msra.mxu0 0.0
        %567 = vmatprep.subr.mxu0 0.0
        %568 = vmatpush1.msra.mxu0 0.0
        %569 = vmatprep.subr.mxu0 0.0
        %570 = vmatpush1.msra.mxu0 0.0
        %571 = vmatprep.mubr.f32.mxu0 0.0
        %572 = vmatmul.mubr.f32.gmra.mrb[0].mxu0 %v299
        %v573 = vpop.f32.mrb[0].mxu0
        %v574 = vadd.f32 %v288, %v573
        %v575 = vpop.f32.mrb[0].mxu0
        %v576 = vadd.f32 %v292, %v575
        %577 = vmatprep.mubr.f32.mxu0 0.0
        %578 = vmatmul.mubr.f32.gmra.mrb[0].mxu0 %v302
        %v579 = vpop.f32.mrb[0].mxu0
        %v580 = vadd.f32 %v288, %v579
        %v581 = vpop.f32.mrb[0].mxu0
        %v582 = vadd.f32 %v292, %v581
        %583 = vmatprep.mubr.f32.mxu0 0.0
        %584 = vmatmul.mubr.f32.gmra.mrb[0].mxu0 %v305
        %v585 = vpop.f32.mrb[0].mxu0
        %v586 = vadd.f32 %v288, %v585
        %v587 = vpop.f32.mrb[0].mxu0
        %v588 = vadd.f32 %v292, %v587
        %589 = vmatprep.mubr.f32.mxu0 0.0
        %590 = vmatmul.mubr.f32.gmra.mrb[0].mxu0 %v308
        %v591 = vpop.f32.mrb[0].mxu0
        %v592 = vadd.f32 %v288, %v591
        %v593 = vpop.f32.mrb[0].mxu0
        %v594 = vadd.f32 %v292, %v593
        %595 = vmatprep.mubr.f32.mxu0 0.0
        %596 = vmatmul.mubr.f32.gmra.mrb[0].mxu0 %v311
        %v597 = vpop.f32.mrb[0].mxu0
        %v598 = vadd.f32 %v288, %v597
        %v599 = vpop.f32.mrb[0].mxu0
        %v600 = vadd.f32 %v292, %v599
        %601 = vmatprep.mubr.f32.mxu0 0.0
        %602 = vmatmul.mubr.f32.gmra.mrb[0].mxu0 %v314
        %v603 = vpop.f32.mrb[0].mxu0
        %v604 = vadd.f32 %v288, %v603
        %v605 = vpop.f32.mrb[0].mxu0
        %v606 = vadd.f32 %v292, %v605
        %607 = vmatprep.mubr.f32.mxu0 0.0
        %608 = vmatmul.mubr.f32.gmra.mrb[0].mxu0 %v317
        %v609 = vpop.f32.mrb[0].mxu0
        %v610 = vadd.f32 %v288, %v609
        %v611 = vpop.f32.mrb[0].mxu0
        %v612 = vadd.f32 %v292, %v611
        %613 = vmatprep.mubr.f32.mxu0 0.0
        %614 = vmatmul.mubr.f32.gmra.mrb[0].mxu0 %v320
        %v615 = vpop.f32.mrb[0].mxu0
        %v616 = vadd.f32 %v288, %v615
        %v617 = vpop.f32.mrb[0].mxu0
        %v618 = vadd.f32 %v292, %v617
        %619 = vmatprep.mubr.f32.mxu0 0.0
        %620 = vmatmul.mubr.f32.gmra.mrb[0].mxu0 %v323
        %v621 = vpop.f32.mrb[0].mxu0
        %v622 = vadd.f32 %v288, %v621
        %v623 = vpop.f32.mrb[0].mxu0
        %v624 = vadd.f32 %v292, %v623
        %625 = vmatprep.mubr.f32.mxu0 0.0
        %626 = vmatmul.mubr.f32.gmra.mrb[0].mxu0 %v326
        %v627 = vpop.f32.mrb[0].mxu0
        %v628 = vadd.f32 %v288, %v627
        %v629 = vpop.f32.mrb[0].mxu0
        %v630 = vadd.f32 %v292, %v629
        %631 = vmatprep.mubr.f32.mxu0 0.0
        %632 = vmatmul.mubr.f32.gmra.mrb[0].mxu0 %v329
        %v633 = vpop.f32.mrb[0].mxu0
        %v634 = vadd.f32 %v288, %v633
        %v635 = vpop.f32.mrb[0].mxu0
        %v636 = vadd.f32 %v292, %v635
        %637 = vmatprep.mubr.f32.mxu0 0.0
        %638 = vmatmul.mubr.f32.gmra.mrb[0].mxu0 %v332
        %v639 = vpop.f32.mrb[0].mxu0
        %v640 = vadd.f32 %v288, %v639
        %v641 = vpop.f32.mrb[0].mxu0
        %v642 = vadd.f32 %v292, %v641
        %643 = vmatprep.mubr.f32.mxu0 0.0
        %644 = vmatmul.mubr.f32.gmra.mrb[0].mxu0 %v335
        %v645 = vpop.f32.mrb[0].mxu0
        %v646 = vadd.f32 %v288, %v645
        %v647 = vpop.f32.mrb[0].mxu0
        %v648 = vadd.f32 %v292, %v647
        %649 = vmatprep.mubr.f32.mxu0 0.0
        %650 = vmatmul.mubr.f32.gmra.mrb[0].mxu0 %v338
        %v651 = vpop.f32.mrb[0].mxu0
        %v652 = vadd.f32 %v288, %v651
        %v653 = vpop.f32.mrb[0].mxu0
        %v654 = vadd.f32 %v292, %v653
        %655 = vmatprep.mubr.f32.mxu0 0.0
        %656 = vmatmul.mubr.f32.gmra.mrb[0].mxu0 %v341
        %v657 = vpop.f32.mrb[0].mxu0
        %v658 = vadd.f32 %v288, %v657
        %v659 = vpop.f32.mrb[0].mxu0
        %v660 = vadd.f32 %v292, %v659
        %661 = vmatprep.mubr.f32.mxu0 0.0
        %662 = vmatmul.mubr.f32.gmra.mrb[0].mxu0 %v344
        %v663 = vpop.f32.mrb[0].mxu0
        %v664 = vadd.f32 %v288, %v663
        %v665 = vpop.f32.mrb[0].mxu0
        %v666 = vadd.f32 %v292, %v665
        %667 = vdwg.mxu0
        %v668 = vmax.f32 %v413, 0.0
        %v669 = vmax.f32 %v415, 0.0
        %v670 = vmax.f32 %v574, 0.0
        %v671 = vmax.f32 %v576, 0.0
        %v672 = vmax.f32 %v419, 0.0
        %v673 = vmax.f32 %v421, 0.0
        %v674 = vmax.f32 %v580, 0.0
        %v675 = vmax.f32 %v582, 0.0
        %v676 = vmax.f32 %v425, 0.0
        %v677 = vmax.f32 %v427, 0.0
        %v678 = vmax.f32 %v586, 0.0
        %v679 = vmax.f32 %v588, 0.0
        %v680 = vmax.f32 %v431, 0.0
        %v681 = vmax.f32 %v433, 0.0
        %v682 = vmax.f32 %v592, 0.0
        %v683 = vmax.f32 %v594, 0.0
        %v684 = vmax.f32 %v437, 0.0
        %v685 = vmax.f32 %v439, 0.0
        %v686 = vmax.f32 %v598, 0.0
        %v687 = vmax.f32 %v600, 0.0
        %v688 = vmax.f32 %v443, 0.0
        %v689 = vmax.f32 %v445, 0.0
        %v690 = vmax.f32 %v604, 0.0
        %v691 = vmax.f32 %v606, 0.0
        %v692 = vmax.f32 %v449, 0.0
        %v693 = vmax.f32 %v451, 0.0
        %v694 = vmax.f32 %v610, 0.0
        %v695 = vmax.f32 %v612, 0.0
        %v696 = vmax.f32 %v455, 0.0
        %v697 = vmax.f32 %v457, 0.0
        %v698 = vmax.f32 %v616, 0.0
        %v699 = vmax.f32 %v618, 0.0
        %v700 = vmax.f32 %v461, 0.0
        %v701 = vmax.f32 %v463, 0.0
        %v702 = vmax.f32 %v622, 0.0
        %v703 = vmax.f32 %v624, 0.0
        %v704 = vmax.f32 %v467, 0.0
        %v705 = vmax.f32 %v469, 0.0
        %v706 = vmax.f32 %v628, 0.0
        %v707 = vmax.f32 %v630, 0.0
        %v708 = vmax.f32 %v473, 0.0
        %v709 = vmax.f32 %v475, 0.0
        %v710 = vmax.f32 %v634, 0.0
        %v711 = vmax.f32 %v636, 0.0
        %v712 = vmax.f32 %v479, 0.0
        %v713 = vmax.f32 %v481, 0.0
        %v714 = vmax.f32 %v640, 0.0
        %v715 = vmax.f32 %v642, 0.0
        %v716 = vmax.f32 %v485, 0.0
        %v717 = vmax.f32 %v487, 0.0
        %v718 = vmax.f32 %v646, 0.0
        %v719 = vmax.f32 %v648, 0.0
        %v720 = vmax.f32 %v491, 0.0
        %v721 = vmax.f32 %v493, 0.0
        %v722 = vmax.f32 %v652, 0.0
        %v723 = vmax.f32 %v654, 0.0
        %v724 = vmax.f32 %v497, 0.0
        %v725 = vmax.f32 %v499, 0.0
        %v726 = vmax.f32 %v658, 0.0
        %v727 = vmax.f32 %v660, 0.0
        %v728 = vmax.f32 %v503, 0.0
        %v729 = vmax.f32 %v505, 0.0
        %v730 = vmax.f32 %v664, 0.0
        %v731 = vmax.f32 %v666, 0.0
        %v732 = vld [vmem:[#allocation2] sm:$0xff]
        %v733 = vld [vmem:[#allocation2 + $0x8] sm:$0xff]
        %v734 = vld [vmem:[#allocation2 + $0x10] sm:$0xff]
        %v735 = vld [vmem:[#allocation2 + $0x18] sm:$0xff]
        %v736 = vld [vmem:[#allocation2 + $0x20] sm:$0xff]
        %v737 = vld [vmem:[#allocation2 + $0x28] sm:$0xff]
        %v738 = vld [vmem:[#allocation2 + $0x30] sm:$0xff]
        %v739 = vld [vmem:[#allocation2 + $0x38] sm:$0xff]
        %v740 = vld [vmem:[#allocation2 + $0x40] sm:$0xff]
        %v741 = vld [vmem:[#allocation2 + $0x48] sm:$0xff]
        %v742 = vld [vmem:[#allocation2 + $0x50] sm:$0xff]
        %v743 = vld [vmem:[#allocation2 + $0x58] sm:$0xff]
        %v744 = vld [vmem:[#allocation2 + $0x60] sm:$0xff]
        %v745 = vld [vmem:[#allocation2 + $0x68] sm:$0xff]
        %v746 = vld [vmem:[#allocation2 + $0x70] sm:$0xff]
        %v747 = vld [vmem:[#allocation2 + $0x78] sm:$0xff]
        %v748 = vld [vmem:[#allocation2 + $0x80] sm:$0xff]
        %v749 = vld [vmem:[#allocation2 + $0x88] sm:$0xff]
        %v750 = vld [vmem:[#allocation2 + $0x90] sm:$0xff]
        %v751 = vld [vmem:[#allocation2 + $0x98] sm:$0xff]
        %v752 = vld [vmem:[#allocation2 + $0xa0] sm:$0xff]
        %v753 = vld [vmem:[#allocation2 + $0xa8] sm:$0xff]
        %v754 = vld [vmem:[#allocation2 + $0xb0] sm:$0xff]
        %v755 = vld [vmem:[#allocation2 + $0xb8] sm:$0xff]
        %v756 = vld [vmem:[#allocation2 + $0xc0] sm:$0xff]
        %v757 = vld [vmem:[#allocation2 + $0xc8] sm:$0xff]
        %v758 = vld [vmem:[#allocation2 + $0xd0] sm:$0xff]
        %v759 = vld [vmem:[#allocation2 + $0xd8] sm:$0xff]
        %v760 = vld [vmem:[#allocation2 + $0xe0] sm:$0xff]
        %v761 = vld [vmem:[#allocation2 + $0xe8] sm:$0xff]
        %v762 = vld [vmem:[#allocation2 + $0xf0] sm:$0xff]
        %v763 = vld [vmem:[#allocation2 + $0xf8] sm:$0xff]
        %v764 = vld [vmem:[#allocation2 + $0x100] sm:$0xff]
        %v765 = vld [vmem:[#allocation2 + $0x108] sm:$0xff]
        %v766 = vld [vmem:[#allocation2 + $0x110] sm:$0xff]
        %v767 = vld [vmem:[#allocation2 + $0x118] sm:$0xff]
        %v768 = vld [vmem:[#allocation2 + $0x120] sm:$0xff]
        %v769 = vld [vmem:[#allocation2 + $0x128] sm:$0xff]
        %v770 = vld [vmem:[#allocation2 + $0x130] sm:$0xff]
        %v771 = vld [vmem:[#allocation2 + $0x138] sm:$0xff]
        %v772 = vld [vmem:[#allocation2 + $0x140] sm:$0xff]
        %v773 = vld [vmem:[#allocation2 + $0x148] sm:$0xff]
        %v774 = vld [vmem:[#allocation2 + $0x150] sm:$0xff]
        %v775 = vld [vmem:[#allocation2 + $0x158] sm:$0xff]
        %v776 = vld [vmem:[#allocation2 + $0x160] sm:$0xff]
        %v777 = vld [vmem:[#allocation2 + $0x168] sm:$0xff]
        %v778 = vld [vmem:[#allocation2 + $0x170] sm:$0xff]
        %v779 = vld [vmem:[#allocation2 + $0x178] sm:$0xff]
        %v780 = vld [vmem:[#allocation2 + $0x180] sm:$0xff]
        %v781 = vld [vmem:[#allocation2 + $0x188] sm:$0xff]
        %v782 = vld [vmem:[#allocation2 + $0x190] sm:$0xff]
        %v783 = vld [vmem:[#allocation2 + $0x198] sm:$0xff]
        %v784 = vld [vmem:[#allocation2 + $0x1a0] sm:$0xff]
        %v785 = vld [vmem:[#allocation2 + $0x1a8] sm:$0xff]
        %v786 = vld [vmem:[#allocation2 + $0x1b0] sm:$0xff]
        %v787 = vld [vmem:[#allocation2 + $0x1b8] sm:$0xff]
        %v788 = vld [vmem:[#allocation2 + $0x1c0] sm:$0xff]
        %v789 = vld [vmem:[#allocation2 + $0x1c8] sm:$0xff]
        %v790 = vld [vmem:[#allocation2 + $0x1d0] sm:$0xff]
        %v791 = vld [vmem:[#allocation2 + $0x1d8] sm:$0xff]
        %v792 = vld [vmem:[#allocation2 + $0x1e0] sm:$0xff]
        %v793 = vld [vmem:[#allocation2 + $0x1e8] sm:$0xff]
        %v794 = vld [vmem:[#allocation2 + $0x1f0] sm:$0xff]
        %v795 = vld [vmem:[#allocation2 + $0x1f8] sm:$0xff]
        %v796 = vld [vmem:[%s4] sm:$0x1]
        %v798 = vlaneseq
        %v799 = vshrl.u32 %v798, 7
        %v800 = vsub.s32 0, %v799
        %v801 = vrot.slane %v796, %v800
        %803 = vmatprep.subr.mxu0 0.0
        %804 = vmatpush1.msra.mxu0 %v732
        %805 = vmatprep.subr.mxu0 0.0
        %806 = vmatpush1.msra.mxu0 %v733
        %807 = vmatprep.subr.mxu0 0.0
        %808 = vmatpush1.msra.mxu0 %v734
        %809 = vmatprep.subr.mxu0 0.0
        %810 = vmatpush1.msra.mxu0 %v735
        %811 = vmatprep.subr.mxu0 0.0
        %812 = vmatpush1.msra.mxu0 %v736
        %813 = vmatprep.subr.mxu0 0.0
        %814 = vmatpush1.msra.mxu0 %v737
        %815 = vmatprep.subr.mxu0 0.0
        %816 = vmatpush1.msra.mxu0 %v738
        %817 = vmatprep.subr.mxu0 0.0
        %818 = vmatpush1.msra.mxu0 %v739
        %819 = vmatprep.subr.mxu0 0.0
        %820 = vmatpush1.msra.mxu0 %v740
        %821 = vmatprep.subr.mxu0 0.0
        %822 = vmatpush1.msra.mxu0 %v741
        %823 = vmatprep.subr.mxu0 0.0
        %824 = vmatpush1.msra.mxu0 %v742
        %825 = vmatprep.subr.mxu0 0.0
        %826 = vmatpush1.msra.mxu0 %v743
        %827 = vmatprep.subr.mxu0 0.0
        %828 = vmatpush1.msra.mxu0 %v744
        %829 = vmatprep.subr.mxu0 0.0
        %830 = vmatpush1.msra.mxu0 %v745
        %831 = vmatprep.subr.mxu0 0.0
        %832 = vmatpush1.msra.mxu0 %v746
        %833 = vmatprep.subr.mxu0 0.0
        %834 = vmatpush1.msra.mxu0 %v747
        %835 = vmatprep.subr.mxu0 0.0
        %836 = vmatpush1.msra.mxu0 %v748
        %837 = vmatprep.subr.mxu0 0.0
        %838 = vmatpush1.msra.mxu0 %v749
        %839 = vmatprep.subr.mxu0 0.0
        %840 = vmatpush1.msra.mxu0 %v750
        %841 = vmatprep.subr.mxu0 0.0
        %842 = vmatpush1.msra.mxu0 %v751
        %843 = vmatprep.subr.mxu0 0.0
        %844 = vmatpush1.msra.mxu0 %v752
        %845 = vmatprep.subr.mxu0 0.0
        %846 = vmatpush1.msra.mxu0 %v753
        %847 = vmatprep.subr.mxu0 0.0
        %848 = vmatpush1.msra.mxu0 %v754
        %849 = vmatprep.subr.mxu0 0.0
        %850 = vmatpush1.msra.mxu0 %v755
        %851 = vmatprep.subr.mxu0 0.0
        %852 = vmatpush1.msra.mxu0 %v756
        %853 = vmatprep.subr.mxu0 0.0
        %854 = vmatpush1.msra.mxu0 %v757
        %855 = vmatprep.subr.mxu0 0.0
        %856 = vmatpush1.msra.mxu0 %v758
        %857 = vmatprep.subr.mxu0 0.0
        %858 = vmatpush1.msra.mxu0 %v759
        %859 = vmatprep.subr.mxu0 0.0
        %860 = vmatpush1.msra.mxu0 %v760
        %861 = vmatprep.subr.mxu0 0.0
        %862 = vmatpush1.msra.mxu0 %v761
        %863 = vmatprep.subr.mxu0 0.0
        %864 = vmatpush1.msra.mxu0 %v762
        %865 = vmatprep.subr.mxu0 0.0
        %866 = vmatpush1.msra.mxu0 %v763
        %867 = vmatprep.mubr.f32.mxu0 %v669
        %868 = vmatmul.mubr.f32.gmra.mrb[0].mxu0 %v668
        %v869 = vpop.f32.mrb[0].mxu0
        %v870 = vadd.f32 %v801, %v869
        %v871 = vpop.f32.mrb[0].mxu0
        %872 = vmatprep.mubr.f32.mxu0 %v673
        %873 = vmatmul.mubr.f32.gmra.mrb[0].mxu0 %v672
        %v874 = vpop.f32.mrb[0].mxu0
        %v875 = vadd.f32 %v801, %v874
        %v876 = vpop.f32.mrb[0].mxu0
        %877 = vmatprep.mubr.f32.mxu0 %v677
        %878 = vmatmul.mubr.f32.gmra.mrb[0].mxu0 %v676
        %v879 = vpop.f32.mrb[0].mxu0
        %v880 = vadd.f32 %v801, %v879
        %v881 = vpop.f32.mrb[0].mxu0
        %882 = vmatprep.mubr.f32.mxu0 %v681
        %883 = vmatmul.mubr.f32.gmra.mrb[0].mxu0 %v680
        %v884 = vpop.f32.mrb[0].mxu0
        %v885 = vadd.f32 %v801, %v884
        %v886 = vpop.f32.mrb[0].mxu0
        %887 = vmatprep.mubr.f32.mxu0 %v685
        %888 = vmatmul.mubr.f32.gmra.mrb[0].mxu0 %v684
        %v889 = vpop.f32.mrb[0].mxu0
        %v890 = vadd.f32 %v801, %v889
        %v891 = vpop.f32.mrb[0].mxu0
        %892 = vmatprep.mubr.f32.mxu0 %v689
        %893 = vmatmul.mubr.f32.gmra.mrb[0].mxu0 %v688
        %v894 = vpop.f32.mrb[0].mxu0
        %v895 = vadd.f32 %v801, %v894
        %v896 = vpop.f32.mrb[0].mxu0
        %897 = vmatprep.mubr.f32.mxu0 %v693
        %898 = vmatmul.mubr.f32.gmra.mrb[0].mxu0 %v692
        %v899 = vpop.f32.mrb[0].mxu0
        %v900 = vadd.f32 %v801, %v899
        %v901 = vpop.f32.mrb[0].mxu0
        %902 = vmatprep.mubr.f32.mxu0 %v697
        %903 = vmatmul.mubr.f32.gmra.mrb[0].mxu0 %v696
        %v904 = vpop.f32.mrb[0].mxu0
        %v905 = vadd.f32 %v801, %v904
        %v906 = vpop.f32.mrb[0].mxu0
        %907 = vmatprep.mubr.f32.mxu0 %v701
        %908 = vmatmul.mubr.f32.gmra.mrb[0].mxu0 %v700
        %v909 = vpop.f32.mrb[0].mxu0
        %v910 = vadd.f32 %v801, %v909
        %v911 = vpop.f32.mrb[0].mxu0
        %912 = vmatprep.mubr.f32.mxu0 %v705
        %913 = vmatmul.mubr.f32.gmra.mrb[0].mxu0 %v704
        %v914 = vpop.f32.mrb[0].mxu0
        %v915 = vadd.f32 %v801, %v914
        %v916 = vpop.f32.mrb[0].mxu0
        %917 = vmatprep.mubr.f32.mxu0 %v709
        %918 = vmatmul.mubr.f32.gmra.mrb[0].mxu0 %v708
        %v919 = vpop.f32.mrb[0].mxu0
        %v920 = vadd.f32 %v801, %v919
        %v921 = vpop.f32.mrb[0].mxu0
        %922 = vmatprep.mubr.f32.mxu0 %v713
        %923 = vmatmul.mubr.f32.gmra.mrb[0].mxu0 %v712
        %v924 = vpop.f32.mrb[0].mxu0
        %v925 = vadd.f32 %v801, %v924
        %v926 = vpop.f32.mrb[0].mxu0
        %927 = vmatprep.mubr.f32.mxu0 %v717
        %928 = vmatmul.mubr.f32.gmra.mrb[0].mxu0 %v716
        %v929 = vpop.f32.mrb[0].mxu0
        %v930 = vadd.f32 %v801, %v929
        %v931 = vpop.f32.mrb[0].mxu0
        %932 = vmatprep.mubr.f32.mxu0 %v721
        %933 = vmatmul.mubr.f32.gmra.mrb[0].mxu0 %v720
        %v934 = vpop.f32.mrb[0].mxu0
        %v935 = vadd.f32 %v801, %v934
        %v936 = vpop.f32.mrb[0].mxu0
        %937 = vmatprep.mubr.f32.mxu0 %v725
        %938 = vmatmul.mubr.f32.gmra.mrb[0].mxu0 %v724
        %v939 = vpop.f32.mrb[0].mxu0
        %v940 = vadd.f32 %v801, %v939
        %v941 = vpop.f32.mrb[0].mxu0
        %942 = vmatprep.mubr.f32.mxu0 %v729
        %943 = vmatmul.mubr.f32.gmra.mrb[0].mxu0 %v728
        %v944 = vpop.f32.mrb[0].mxu0
        %v945 = vadd.f32 %v801, %v944
        %v946 = vpop.f32.mrb[0].mxu0
        %947 = vdwg.mxu0
        %948 = vmatprep.subr.mxu0 0.0
        %949 = vmatpush1.msra.mxu0 %v764
        %950 = vmatprep.subr.mxu0 0.0
        %951 = vmatpush1.msra.mxu0 %v765
        %952 = vmatprep.subr.mxu0 0.0
        %953 = vmatpush1.msra.mxu0 %v766
        %954 = vmatprep.subr.mxu0 0.0
        %955 = vmatpush1.msra.mxu0 %v767
        %956 = vmatprep.subr.mxu0 0.0
        %957 = vmatpush1.msra.mxu0 %v768
        %958 = vmatprep.subr.mxu0 0.0
        %959 = vmatpush1.msra.mxu0 %v769
        %960 = vmatprep.subr.mxu0 0.0
        %961 = vmatpush1.msra.mxu0 %v770
        %962 = vmatprep.subr.mxu0 0.0
        %963 = vmatpush1.msra.mxu0 %v771
        %964 = vmatprep.subr.mxu0 0.0
        %965 = vmatpush1.msra.mxu0 %v772
        %966 = vmatprep.subr.mxu0 0.0
        %967 = vmatpush1.msra.mxu0 %v773
        %968 = vmatprep.subr.mxu0 0.0
        %969 = vmatpush1.msra.mxu0 %v774
        %970 = vmatprep.subr.mxu0 0.0
        %971 = vmatpush1.msra.mxu0 %v775
        %972 = vmatprep.subr.mxu0 0.0
        %973 = vmatpush1.msra.mxu0 %v776
        %974 = vmatprep.subr.mxu0 0.0
        %975 = vmatpush1.msra.mxu0 %v777
        %976 = vmatprep.subr.mxu0 0.0
        %977 = vmatpush1.msra.mxu0 %v778
        %978 = vmatprep.subr.mxu0 0.0
        %979 = vmatpush1.msra.mxu0 %v779
        %980 = vmatprep.subr.mxu0 0.0
        %981 = vmatpush1.msra.mxu0 %v780
        %982 = vmatprep.subr.mxu0 0.0
        %983 = vmatpush1.msra.mxu0 %v781
        %984 = vmatprep.subr.mxu0 0.0
        %985 = vmatpush1.msra.mxu0 %v782
        %986 = vmatprep.subr.mxu0 0.0
        %987 = vmatpush1.msra.mxu0 %v783
        %988 = vmatprep.subr.mxu0 0.0
        %989 = vmatpush1.msra.mxu0 %v784
        %990 = vmatprep.subr.mxu0 0.0
        %991 = vmatpush1.msra.mxu0 %v785
        %992 = vmatprep.subr.mxu0 0.0
        %993 = vmatpush1.msra.mxu0 %v786
        %994 = vmatprep.subr.mxu0 0.0
        %995 = vmatpush1.msra.mxu0 %v787
        %996 = vmatprep.subr.mxu0 0.0
        %997 = vmatpush1.msra.mxu0 %v788
        %998 = vmatprep.subr.mxu0 0.0
        %999 = vmatpush1.msra.mxu0 %v789
        %1000 = vmatprep.subr.mxu0 0.0
        %1001 = vmatpush1.msra.mxu0 %v790
        %1002 = vmatprep.subr.mxu0 0.0
        %1003 = vmatpush1.msra.mxu0 %v791
        %1004 = vmatprep.subr.mxu0 0.0
        %1005 = vmatpush1.msra.mxu0 %v792
        %1006 = vmatprep.subr.mxu0 0.0
        %1007 = vmatpush1.msra.mxu0 %v793
        %1008 = vmatprep.subr.mxu0 0.0
        %1009 = vmatpush1.msra.mxu0 %v794
        %1010 = vmatprep.subr.mxu0 0.0
        %1011 = vmatpush1.msra.mxu0 %v795
        %1012 = vmatprep.mubr.f32.mxu0 %v671
        %1013 = vmatmul.mubr.f32.gmra.mrb[0].mxu0 %v670
        %v1014 = vpop.f32.mrb[0].mxu0
        %v1015 = vadd.f32 %v870, %v1014
        %v1016 = vpop.f32.mrb[0].mxu0
        %1017 = vmatprep.mubr.f32.mxu0 %v675
        %1018 = vmatmul.mubr.f32.gmra.mrb[0].mxu0 %v674
        %v1019 = vpop.f32.mrb[0].mxu0
        %v1020 = vadd.f32 %v875, %v1019
        %v1021 = vpop.f32.mrb[0].mxu0
        %1022 = vmatprep.mubr.f32.mxu0 %v679
        %1023 = vmatmul.mubr.f32.gmra.mrb[0].mxu0 %v678
        %v1024 = vpop.f32.mrb[0].mxu0
        %v1025 = vadd.f32 %v880, %v1024
        %v1026 = vpop.f32.mrb[0].mxu0
        %1027 = vmatprep.mubr.f32.mxu0 %v683
        %1028 = vmatmul.mubr.f32.gmra.mrb[0].mxu0 %v682
        %v1029 = vpop.f32.mrb[0].mxu0
        %v1030 = vadd.f32 %v885, %v1029
        %v1031 = vpop.f32.mrb[0].mxu0
        %1032 = vmatprep.mubr.f32.mxu0 %v687
        %1033 = vmatmul.mubr.f32.gmra.mrb[0].mxu0 %v686
        %v1034 = vpop.f32.mrb[0].mxu0
        %v1035 = vadd.f32 %v890, %v1034
        %v1036 = vpop.f32.mrb[0].mxu0
        %1037 = vmatprep.mubr.f32.mxu0 %v691
        %1038 = vmatmul.mubr.f32.gmra.mrb[0].mxu0 %v690
        %v1039 = vpop.f32.mrb[0].mxu0
        %v1040 = vadd.f32 %v895, %v1039
        %v1041 = vpop.f32.mrb[0].mxu0
        %1042 = vmatprep.mubr.f32.mxu0 %v695
        %1043 = vmatmul.mubr.f32.gmra.mrb[0].mxu0 %v694
        %v1044 = vpop.f32.mrb[0].mxu0
        %v1045 = vadd.f32 %v900, %v1044
        %v1046 = vpop.f32.mrb[0].mxu0
        %1047 = vmatprep.mubr.f32.mxu0 %v699
        %1048 = vmatmul.mubr.f32.gmra.mrb[0].mxu0 %v698
        %v1049 = vpop.f32.mrb[0].mxu0
        %v1050 = vadd.f32 %v905, %v1049
        %v1051 = vpop.f32.mrb[0].mxu0
        %1052 = vmatprep.mubr.f32.mxu0 %v703
        %1053 = vmatmul.mubr.f32.gmra.mrb[0].mxu0 %v702
        %v1054 = vpop.f32.mrb[0].mxu0
        %v1055 = vadd.f32 %v910, %v1054
        %v1056 = vpop.f32.mrb[0].mxu0
        %1057 = vmatprep.mubr.f32.mxu0 %v707
        %1058 = vmatmul.mubr.f32.gmra.mrb[0].mxu0 %v706
        %v1059 = vpop.f32.mrb[0].mxu0
        %v1060 = vadd.f32 %v915, %v1059
        %v1061 = vpop.f32.mrb[0].mxu0
        %1062 = vmatprep.mubr.f32.mxu0 %v711
        %1063 = vmatmul.mubr.f32.gmra.mrb[0].mxu0 %v710
        %v1064 = vpop.f32.mrb[0].mxu0
        %v1065 = vadd.f32 %v920, %v1064
        %v1066 = vpop.f32.mrb[0].mxu0
        %1067 = vmatprep.mubr.f32.mxu0 %v715
        %1068 = vmatmul.mubr.f32.gmra.mrb[0].mxu0 %v714
        %v1069 = vpop.f32.mrb[0].mxu0
        %v1070 = vadd.f32 %v925, %v1069
        %v1071 = vpop.f32.mrb[0].mxu0
        %1072 = vmatprep.mubr.f32.mxu0 %v719
        %1073 = vmatmul.mubr.f32.gmra.mrb[0].mxu0 %v718
        %v1074 = vpop.f32.mrb[0].mxu0
        %v1075 = vadd.f32 %v930, %v1074
        %v1076 = vpop.f32.mrb[0].mxu0
        %1077 = vmatprep.mubr.f32.mxu0 %v723
        %1078 = vmatmul.mubr.f32.gmra.mrb[0].mxu0 %v722
        %v1079 = vpop.f32.mrb[0].mxu0
        %v1080 = vadd.f32 %v935, %v1079
        %v1081 = vpop.f32.mrb[0].mxu0
        %1082 = vmatprep.mubr.f32.mxu0 %v727
        %1083 = vmatmul.mubr.f32.gmra.mrb[0].mxu0 %v726
        %v1084 = vpop.f32.mrb[0].mxu0
        %v1085 = vadd.f32 %v940, %v1084
        %v1086 = vpop.f32.mrb[0].mxu0
        %1087 = vmatprep.mubr.f32.mxu0 %v731
        %1088 = vmatmul.mubr.f32.gmra.mrb[0].mxu0 %v730
        %v1089 = vpop.f32.mrb[0].mxu0
        %v1090 = vadd.f32 %v945, %v1089
        %v1091 = vpop.f32.mrb[0].mxu0
        %1092 = vdwg.mxu0
        %1093 = vst [vmem:[%s241] sm:$0xff] %v1015
        %1094 = vst [vmem:[%s241 + $0x8] sm:$0xff] %v1020
        %1095 = vst [vmem:[%s241 + $0x10] sm:$0xff] %v1025
        %1096 = vst [vmem:[%s241 + $0x18] sm:$0xff] %v1030
        %1097 = vst [vmem:[%s241 + $0x20] sm:$0xff] %v1035
        %1098 = vst [vmem:[%s241 + $0x28] sm:$0xff] %v1040
        %1099 = vst [vmem:[%s241 + $0x30] sm:$0xff] %v1045
        %1100 = vst [vmem:[%s241 + $0x38] sm:$0xff] %v1050
        %1101 = vst [vmem:[%s241 + $0x40] sm:$0xff] %v1055
        %1102 = vst [vmem:[%s241 + $0x48] sm:$0xff] %v1060
        %1103 = vst [vmem:[%s241 + $0x50] sm:$0xff] %v1065
        %1104 = vst [vmem:[%s241 + $0x58] sm:$0xff] %v1070
        %1105 = vst [vmem:[%s241 + $0x60] sm:$0xff] %v1075
        %1106 = vst [vmem:[%s241 + $0x68] sm:$0xff] %v1080
        %1107 = vst [vmem:[%s241 + $0x70] sm:$0xff] %v1085
        %1108 = vst [vmem:[%s241 + $0x78] sm:$0xff] %v1090
        %s1109 = smul.u32 16, %s17
        %p1110 = scmp.lt.s32.totalorder %s1109, 31
        %s1111 = scalar_select %p1110, %s1109, 31
        %s1112 = smul.addr %s1111, 8
        %s1113 = scalar_lea.vmem %s5, %s1112
        // Predicated region
        $region45: #{mlp_pallas.1} parent=39 // pred_check
          %p1114 = pneg %p145
        $region46: #{mlp_pallas.1} parent=39 // pred_check_branch
          %1116 = sbr.rel (%p1114) target = $region48
        $region47: #{mlp_pallas.1} parent=39 // pred_region
          %s1117 = smul.u32 16, %s17
        $region48: #{mlp_pallas.1} parent=39 // pred_fallthru
          _
      $region40: #{mlp_pallas.1} parent=5 // pred_fallthru
        _
      %p1118 = scmp.le.s32.totalorder 2, %s12
      // Predicated region
      $region49: #{mlp_pallas.1} parent=5 // pred_check
        %p1119 = pneg %p1118
      $region50: #{mlp_pallas.1} parent=5 // pred_check_branch
        %1121 = sbr.rel (%p1119) target = $region52
      $region51: #{mlp_pallas.1} parent=5 // pred_region
        %s1122 = ssub.s32 %s12, 2
        // Predicated region
        $region53: #{mlp_pallas.1} parent=51 // pred_check
          %p1123 = pneg %p151
        $region54: #{mlp_pallas.1} parent=51 // pred_check_branch
          %1125 = sbr.rel (%p1123) target = $region56
        $region55: #{mlp_pallas.1} parent=51 // pred_region
          %s1126 = smul.u32 16, %s18
          %p1127 = scmp.lt.s32.totalorder %s1126, 31
          %s1128 = scalar_select %p1127, %s1126, 31
          %s1129 = smul.addr %s1128, 8
          %s1130 = scalar_lea.vmem %s5, %s1129
        $region56: #{mlp_pallas.1} parent=51 // pred_fallthru
          _
      $region52: #{mlp_pallas.1} parent=5 // pred_fallthru
        _
    $region6: #{mlp_pallas.1} parent=1 // loop_footer
      %s16 = sadd.s32 1, %s12
    $region7: #{mlp_pallas.1} parent=1 // loop_footer_branch
      %11 = sbr.rel target = $region3
    $region8: #{mlp_pallas.1} parent=1 // loop_exit
      _
    %1131 = vsyncpa [#allocation3], 1
    %s1132 = scalar_lea.sflag [#allocation3], 1
    %1133 = vsyncpa %s1132, 1

</llo_original>
